<compile_context>
chip_gen: v7x
topology: tpu7x:2x2x1
jax: 0.10.0
libtpu: 0.0.40
codegen_flags: <defaults>
</compile_context>

<pallas_src>
import jax
import jax.numpy as jnp
import numpy as np
from jax.experimental import pallas as pl
from jax.experimental.pallas import tpu as pltpu


def noisy_nn_kernel(x_ref, w1_ref, b1_ref, w2p_ref, b2p_ref, o_ref):
    # Hidden layer: bf16 x bf16 MXU matmul with f32 accumulation, f32 epilogue.
    h = jnp.dot(x_ref[...], w1_ref[...], preferred_element_type=jnp.float32)
    h = jnp.maximum(h + b1_ref[...], 0.0)                      # (tile_b, H) f32
    # Fused output projection: column 0 -> mean head (w2, b2),
    # column 1 -> clamped logvar (zero weights + bias).
    out = jnp.dot(h, w2p_ref[...], preferred_element_type=jnp.float32) + b2p_ref[...]
    # Lane-dense store: (tile_b, 2) -> (2, tile_b).  Transpose uses the idle XLU.
    o_ref[...] = out.T


def noisy_nn_forward(x, w1, b1, w2, b2, logvar, *, tile_b=None, transposed_out=False):
    """x: (B, D); w1: (D, H); b1: (1, H); w2: (H, 1); b2: (1, 1); logvar: (1, 1).

    Returns (B, 2) float32 (or (2, B) lane-dense if transposed_out=True).
    """
    B, D = x.shape
    H = w1.shape[1]

    # bf16 for the streams feeding the MXU (x dominates HBM traffic); for peak
    # perf the caller should already hold x in bf16 so this cast is a no-op /
    # fuses with the producer.
    x_bf = x.astype(jnp.bfloat16)
    w1_bf = w1.astype(jnp.bfloat16)
    b1_f32 = b1.astype(jnp.float32)

    # Fold second linear + clamped logvar into a single (H, 2) projection.
    w2_f32 = w2.astype(jnp.float32)
    w2p = jnp.concatenate([w2_f32, jnp.zeros_like(w2_f32)], axis=1)        # (H, 2)
    lv = jnp.minimum(logvar.astype(jnp.float32).reshape(1, 1), 20.0)       # clamp(max=20)
    b2p = jnp.concatenate([b2.astype(jnp.float32).reshape(1, 1), lv], axis=1)  # (1, 2)

    # --- batch tiling ----------------------------------------------------------
    if tile_b is None:
        if B <= 512:
            tile_b = B                      # tiny problem: one full-array block
        else:
            # >= 2 (target 8) grid steps so v7x's two TensorCores both get work,
            # >= 512 rows/tile to amortize the ~0.35us per-step overhead,
            # cap 4096 keeps double-buffered bf16 x blocks well inside v5e's
            # 16 MiB scoped-VMEM default.
            tile_b = min(4096, max(512, 128 * pl.cdiv(pl.cdiv(B, 8), 128)))
    if tile_b != B:
        # Lane alignment for the (2, tile_b) output block (and sublane for x).
        assert tile_b % 128 == 0, "tile_b must be a multiple of 128 when tiling"
    grid = (pl.cdiv(B, tile_b),)

    out_t = pl.pallas_call(
        noisy_nn_kernel,
        out_shape=jax.ShapeDtypeStruct((2, B), jnp.float32),
        grid_spec=pltpu.PrefetchScalarGridSpec(
            num_scalar_prefetch=0,
            grid=grid,
            in_specs=[
                pl.BlockSpec((tile_b, D), lambda i: (i, 0)),   # x: tiled over batch (bf16)
                pl.BlockSpec((D, H), lambda i: (0, 0)),        # w1: VMEM-resident (bf16)
                pl.BlockSpec((1, H), lambda i: (0, 0)),        # b1: resident (f32)
                pl.BlockSpec((H, 2), lambda i: (0, 0)),        # fused W2': resident (f32)
                pl.BlockSpec((1, 2), lambda i: (0, 0)),        # fused b2': resident (f32)
            ],
            out_specs=pl.BlockSpec((2, tile_b), lambda i: (0, i)),  # lane-dense output
        ),
        compiler_params=pltpu.CompilerParams(
            dimension_semantics=("parallel",),
        ),
    )(x_bf, w1_bf, b1_f32, w2p, b2p)

    if transposed_out:
        return out_t            # (2, B), lane-dense: consume directly if possible
    return out_t.T              # (B, 2), matches the PyTorch module; tiny XLA op


def xavier_uniform(key, fan_in, fan_out):
    # Matches nn.init.xavier_uniform_ (gain=1) for a Linear weight (out, in);
    # we store the transpose (in, out).
    limit = np.sqrt(6.0 / (fan_in + fan_out))
    return jax.random.uniform(key, (fan_in, fan_out), jnp.float32, -limit, limit)


def reference(x, w1, b1, w2, b2, logvar):
    # Mirror the kernel's bf16 rounding of the first-layer inputs; f32 math.
    xr = x.astype(jnp.bfloat16).astype(jnp.float32)
    w1r = w1.astype(jnp.bfloat16).astype(jnp.float32)
    h = jnp.maximum(jnp.dot(xr, w1r, precision="highest") + b1, 0.0)
    out = jnp.dot(h, w2, precision="highest") + b2
    lv = jnp.minimum(logvar[0, 0], 20.0) * jnp.ones_like(out)
    return jnp.concatenate([out, lv], axis=-1)


if __name__ == "__main__":
    key = jax.random.PRNGKey(0)
    k_x, k_w1, k_b1, k_w2, k_b2, k_xl, k_xp = jax.random.split(key, 7)

    B, D, H = 8, 16, 50  # batch, input dim, hidden (num_hiddens=[50]), nout=1

    x = jax.random.normal(k_x, (B, D), jnp.float32)

    # Linear 1: (D -> H), xavier_uniform weight, small bias
    w1 = xavier_uniform(k_w1, D, H)
    b1 = (jax.random.uniform(k_b1, (1, H), jnp.float32) - 0.5) * 0.1
    # Linear 2: (H -> 1)
    w2 = xavier_uniform(k_w2, H, 1)
    b2 = (jax.random.uniform(k_b2, (1, 1), jnp.float32) - 0.5) * 0.1
    # logvar = log(0.001), scalar parameter stored as (1, 1)
    logvar = jnp.full((1, 1), np.log(0.001), jnp.float32)

    # --- small-shape run (single grid step, full-array blocks) ---
    out = jax.block_until_ready(noisy_nn_forward(x, w1, b1, w2, b2, logvar))
    ref = reference(x, w1, b1, w2, b2, logvar)
    assert out.shape == (B, 2)
    np.testing.assert_allclose(np.asarray(out), np.asarray(ref), rtol=5e-3, atol=5e-3)

    # --- multi-tile grid, lane-aligned (2, 128) output blocks ---
    BL = 512
    xl = jax.random.normal(k_xl, (BL, D), jnp.float32)
    out_l = jax.block_until_ready(
        noisy_nn_forward(xl, w1, b1, w2, b2, logvar, tile_b=128)
    )
    ref_l = reference(xl, w1, b1, w2, b2, logvar)
    np.testing.assert_allclose(np.asarray(out_l), np.asarray(ref_l), rtol=5e-3, atol=5e-3)

    # --- partial last tile (B not a multiple of tile_b): masked writeback path ---
    BP = 320
    xp = jax.random.normal(k_xp, (BP, D), jnp.float32)
    out_p = jax.block_until_ready(
        noisy_nn_forward(xp, w1, b1, w2, b2, logvar, tile_b=128)
    )
    ref_p = reference(xp, w1, b1, w2, b2, logvar)
    np.testing.assert_allclose(np.asarray(out_p), np.asarray(ref_p), rtol=5e-3, atol=5e-3)

    print("KERNEL_OK")
</pallas_src>

<mosaic_0001>
module attributes {stable_mosaic.version = 11 : i64} {
  func.func @noisy_nn_kernel(%arg0: i32, %arg1: memref<8x16xbf16, #tpu.memory_space<vmem>>, %arg2: memref<16x50xbf16, #tpu.memory_space<vmem>>, %arg3: memref<1x50xf32, #tpu.memory_space<vmem>>, %arg4: memref<50x2xf32, #tpu.memory_space<vmem>>, %arg5: memref<1x2xf32, #tpu.memory_space<vmem>>, %arg6: memref<2x8xf32, #tpu.memory_space<vmem>>) attributes {dimension_semantics = [#tpu.dimension_semantics<parallel>], iteration_bounds = array<i64: 1>, scalar_prefetch = 0 : i64, scratch_operands = 0 : i64, tpu.core_type = #tpu.core_type<tc>, window_params = [{transform_indices = @transform_0, window_bounds = array<i64: 8, 16>}, {pipeline_mode = #tpu.pipeline_mode<synchronous>, transform_indices = @transform_1, window_bounds = array<i64: 16, 50>}, {pipeline_mode = #tpu.pipeline_mode<synchronous>, transform_indices = @transform_2, window_bounds = array<i64: 1, 50>}, {pipeline_mode = #tpu.pipeline_mode<synchronous>, transform_indices = @transform_3, window_bounds = array<i64: 50, 2>}, {pipeline_mode = #tpu.pipeline_mode<synchronous>, transform_indices = @transform_4, window_bounds = array<i64: 1, 2>}, {transform_indices = @transform_5, window_bounds = array<i64: 2, 8>}]} {
    %c0 = arith.constant 0 : index
    %c0_0 = arith.constant 0 : index
    %0 = vector.load %arg1[%c0, %c0_0] : memref<8x16xbf16, #tpu.memory_space<vmem>>, vector<8x16xbf16>
    %c0_1 = arith.constant 0 : index
    %c0_2 = arith.constant 0 : index
    %1 = vector.load %arg2[%c0_1, %c0_2] : memref<16x50xbf16, #tpu.memory_space<vmem>>, vector<16x50xbf16>
    %cst = arith.constant dense<0.000000e+00> : vector<8x50xf32>
    %2 = tpu.matmul %0, %1, %cst {dimension_numbers = #tpu.dot_dimension_numbers<[1], [0], [0], [1], [0, 0, 1, 1], [], []>} : vector<8x16xbf16>, vector<16x50xbf16>, vector<8x50xf32> -> vector<8x50xf32>
    %c0_3 = arith.constant 0 : index
    %c0_4 = arith.constant 0 : index
    %3 = vector.load %arg3[%c0_3, %c0_4] : memref<1x50xf32, #tpu.memory_space<vmem>>, vector<1x50xf32>
    %4 = vector.broadcast %3 : vector<1x50xf32> to vector<8x50xf32>
    %5 = arith.addf %2, %4 : vector<8x50xf32>
    %cst_5 = arith.constant 0.000000e+00 : f32
    %6 = vector.broadcast %cst_5 : f32 to vector<8x50xf32>
    %7 = arith.maximumf %5, %6 : vector<8x50xf32>
    %c0_6 = arith.constant 0 : index
    %c0_7 = arith.constant 0 : index
    %8 = vector.load %arg4[%c0_6, %c0_7] : memref<50x2xf32, #tpu.memory_space<vmem>>, vector<50x2xf32>
    %cst_8 = arith.constant dense<0.000000e+00> : vector<8x2xf32>
    %9 = tpu.matmul %7, %8, %cst_8 {dimension_numbers = #tpu.dot_dimension_numbers<[1], [0], [0], [1], [0, 0, 1, 1], [], []>} : vector<8x50xf32>, vector<50x2xf32>, vector<8x2xf32> -> vector<8x2xf32>
    %c0_9 = arith.constant 0 : index
    %c0_10 = arith.constant 0 : index
    %10 = vector.load %arg5[%c0_9, %c0_10] : memref<1x2xf32, #tpu.memory_space<vmem>>, vector<1x2xf32>
    %11 = vector.broadcast %10 : vector<1x2xf32> to vector<8x2xf32>
    %12 = arith.addf %9, %11 : vector<8x2xf32>
    %13 = tpu.transpose %12, [1, 0] : vector<8x2xf32> -> vector<2x8xf32>
    %c0_11 = arith.constant 0 : index
    %c0_12 = arith.constant 0 : index
    %14 = vector.load %arg6[%c0_11, %c0_12] : memref<2x8xf32, #tpu.memory_space<vmem>>, vector<2x8xf32>
    tpu.vector_store %arg6[%c0_11, %c0_12], %13 {strides = array<i32>} : memref<2x8xf32, #tpu.memory_space<vmem>>, vector<2x8xf32>,
    return
  }
  func.func @transform_0(%arg0: i32) -> (i32, i32) {
    %c0_i32 = arith.constant 0 : i32
    %c0_i32_0 = arith.constant 0 : i32
    return %arg0, %c0_i32 : i32, i32
  }
  func.func @transform_1(%arg0: i32) -> (i32, i32) {
    %c0_i32 = arith.constant 0 : i32
    %c0_i32_0 = arith.constant 0 : i32
    %c0_i32_1 = arith.constant 0 : i32
    return %c0_i32, %c0_i32_0 : i32, i32
  }
  func.func @transform_2(%arg0: i32) -> (i32, i32) {
    %c0_i32 = arith.constant 0 : i32
    %c0_i32_0 = arith.constant 0 : i32
    %c0_i32_1 = arith.constant 0 : i32
    return %c0_i32, %c0_i32_0 : i32, i32
  }
  func.func @transform_3(%arg0: i32) -> (i32, i32) {
    %c0_i32 = arith.constant 0 : i32
    %c0_i32_0 = arith.constant 0 : i32
    %c0_i32_1 = arith.constant 0 : i32
    return %c0_i32, %c0_i32_0 : i32, i32
  }
  func.func @transform_4(%arg0: i32) -> (i32, i32) {
    %c0_i32 = arith.constant 0 : i32
    %c0_i32_0 = arith.constant 0 : i32
    %c0_i32_1 = arith.constant 0 : i32
    return %c0_i32, %c0_i32_0 : i32, i32
  }
  func.func @transform_5(%arg0: i32) -> (i32, i32) {
    %c0_i32 = arith.constant 0 : i32
    %c0_i32_0 = arith.constant 0 : i32
    return %c0_i32, %arg0 : i32, i32
  }
}

</mosaic_0001>

<llo_original>
// kernel: tpu_custom_call.1
$region0: #{tpu_custom_call.1}
  #allocation0 [shape = 'u32[]', space=smem, size = 0x4, offset = 0x4, fixed_abs, tag = 'smem constant byte address 0x4 - core index']
  #allocation1 [shape = 'u32[144,128]{1,0:T(1,128)}', space=vmem, size = 0x12000, scoped, tag = 'internal scratch']
  %s0 = inlined_call_operand.vmem [shape: bf16[8,16], index: 0, kind: input, shape index: {}]
  %s1 = inlined_call_operand.vmem [shape: bf16[16,50], index: 1, kind: input, shape index: {}]
  %s2 = inlined_call_operand.vmem [shape: f32[1,50], index: 2, kind: input, shape index: {}]
  %s3 = inlined_call_operand.vmem [shape: f32[50,2], index: 3, kind: input, shape index: {}]
  %s4 = inlined_call_operand.vmem [shape: f32[1,2], index: 4, kind: input, shape index: {}]
  %s5 = inlined_call_operand.hbm [shape: f32[2,8], index: 5, kind: output, shape index: {}]
  %s6 = sld [smem:[#allocation0]]
  $region30: #{tpu_custom_call.1} parent=0
    _
  %s8 = ssub.s32 1, %s6
  %s9 = scalar_select 0, %s8, %s6
  $region1: #{tpu_custom_call.1} parent=0
    #allocation2 [shape = 'u8[1024]{0}', space=vmem, size = 0x400, scoped, tag = 'output window, operand 0, single buffered']
    #allocation3 [shape = 's32[1]{0}', space=sflag, size = 0x4, scoped, tag = 'scoped memory for tpu_custom_call.1']
    %10 = vsyncpa [#allocation3], 0
    // Predicated region
    $region2: #{tpu_custom_call.1} parent=1 // pred_check
      _
    $region3: #{tpu_custom_call.1} parent=1 // pred_check_branch
      %12 = sbr.rel (0) target = $region5
    $region4: #{tpu_custom_call.1} parent=1 // pred_region
      _
    $region5: #{tpu_custom_call.1} parent=1 // pred_fallthru
      _
    // Predicated region
    $region6: #{tpu_custom_call.1} parent=1 // pred_check
      _
    $region7: #{tpu_custom_call.1} parent=1 // pred_check_branch
      %14 = sbr.rel (0) target = $region9
    $region8: #{tpu_custom_call.1} parent=1 // pred_region
      _
    $region9: #{tpu_custom_call.1} parent=1 // pred_fallthru
      _
    // Predicated region
    $region10: #{tpu_custom_call.1} parent=1 // pred_check
      _
    $region11: #{tpu_custom_call.1} parent=1 // pred_check_branch
      %16 = sbr.rel (0) target = $region13
    $region12: #{tpu_custom_call.1} parent=1 // pred_region
      _
    $region13: #{tpu_custom_call.1} parent=1 // pred_fallthru
      _
    // Predicated region
    $region14: #{tpu_custom_call.1} parent=1 // pred_check
      _
    $region15: #{tpu_custom_call.1} parent=1 // pred_check_branch
      %18 = sbr.rel (0) target = $region17
    $region16: #{tpu_custom_call.1} parent=1 // pred_region
      _
    $region17: #{tpu_custom_call.1} parent=1 // pred_fallthru
      _
    // Predicated region
    $region18: #{tpu_custom_call.1} parent=1 // pred_check
      _
    $region19: #{tpu_custom_call.1} parent=1 // pred_check_branch
      %20 = sbr.rel (0) target = $region21
    $region20: #{tpu_custom_call.1} parent=1 // pred_region
      _
    $region21: #{tpu_custom_call.1} parent=1 // pred_fallthru
      _
    %v22 = vld [vmem:[%s0] sm:$0xf]
    %v23 = vld [vmem:[%s1] sm:$0xf]
    %v24 = vld [vmem:[%s1 + $0x4] sm:$0xf]
    %v25 = vld [vmem:[%s2] sm:$0x1]
    %v27 = vlaneseq
    %v28 = vshrl.u32 %v27, 7
    %v29 = vsub.s32 0, %v28
    %v30 = vrot.slane %v25, %v29
    %v34 = vunpack.c.l.b16 %v23
    %v35 = vunpack.c.l.b16 %v24
    %v36 = vpack.c.b16 %v35, %v34
    %vm38 = vcmask 130048
    %v40 = vsel %vm38, %v22, 0
    %42 = vmatprep.subr.bf16.mxu0 0
    %43 = vmatpush1.bf16.msra.mxu0 %v36
    %44 = vmatprep.subr.bf16.mxu0 0
    %45 = vmatpush1.bf16.msra.mxu0 0
    %46 = vmatprep.subr.bf16.mxu0 0
    %47 = vmatpush1.bf16.msra.mxu0 0
    %48 = vmatprep.subr.bf16.mxu0 0
    %49 = vmatpush1.bf16.msra.mxu0 0
    %50 = vmatprep.subr.bf16.mxu0 0
    %51 = vmatpush1.bf16.msra.mxu0 0
    %52 = vmatprep.subr.bf16.mxu0 0
    %53 = vmatpush1.bf16.msra.mxu0 0
    %54 = vmatprep.subr.bf16.mxu0 0
    %55 = vmatpush1.bf16.msra.mxu0 0
    %56 = vmatprep.subr.bf16.mxu0 0
    %57 = vmatpush1.bf16.msra.mxu0 0
    %58 = vmatprep.subr.bf16.mxu0 0
    %59 = vmatpush1.bf16.msra.mxu0 0
    %60 = vmatprep.subr.bf16.mxu0 0
    %61 = vmatpush1.bf16.msra.mxu0 0
    %62 = vmatprep.subr.bf16.mxu0 0
    %63 = vmatpush1.bf16.msra.mxu0 0
    %64 = vmatprep.subr.bf16.mxu0 0
    %65 = vmatpush1.bf16.msra.mxu0 0
    %66 = vmatprep.subr.bf16.mxu0 0
    %67 = vmatpush1.bf16.msra.mxu0 0
    %68 = vmatprep.subr.bf16.mxu0 0
    %69 = vmatpush1.bf16.msra.mxu0 0
    %70 = vmatprep.subr.bf16.mxu0 0
    %71 = vmatpush1.bf16.msra.mxu0 0
    %72 = vmatprep.subr.bf16.mxu0 0
    %73 = vmatpush1.bf16.msra.mxu0 0
    %74 = vmatprep.mubr.bf16.mxu0 0
    %75 = vmatmul.mubr.bf16.gmra.mrb[0].mxu0 %v40
    %v76 = vpop.f32.mrb[0].mxu0
    %v77 = vadd.f32 %v30, %v76
    %v78 = vpop.f32.mrb[0].mxu0
    %v79 = vpop.f32.mrb[0].mxu0
    %v80 = vpop.f32.mrb[0].mxu0
    %81 = vdwg.mxu0
    %v82 = vmax.f32 %v77, 0.0
    %v83 = vld [vmem:[%s3] sm:$0xff]
    %v84 = vld [vmem:[%s3 + $0x8] sm:$0xff]
    %v85 = vld [vmem:[%s3 + $0x10] sm:$0xff]
    %v86 = vld [vmem:[%s3 + $0x18] sm:$0xff]
    %v87 = vld [vmem:[%s3 + $0x20] sm:$0xff]
    %v88 = vld [vmem:[%s3 + $0x28] sm:$0xff]
    %v89 = vld [vmem:[%s3 + $0x30] sm:$0x3]
    %v90 = vld [vmem:[%s4] sm:$0x1]
    %v92 = vlaneseq
    %v93 = vshrl.u32 %v92, 7
    %v94 = vsub.s32 0, %v93
    %v95 = vrot.slane %v90, %v94
    %vm97 = vcmask 408576
    %v99 = vsel %vm97, %v82, 0
    %vm101 = vcmask 1041408
    %v103 = vsel %vm101, %v89, 0
    %105 = vmatprep.subr.mxu0 0.0
    %106 = vmatpush1.msra.mxu0 %v83
    %107 = vmatprep.subr.mxu0 0.0
    %108 = vmatpush1.msra.mxu0 %v84
    %109 = vmatprep.subr.mxu0 0.0
    %110 = vmatpush1.msra.mxu0 %v85
    %111 = vmatprep.subr.mxu0 0.0
    %112 = vmatpush1.msra.mxu0 %v86
    %113 = vmatprep.subr.mxu0 0.0
    %114 = vmatpush1.msra.mxu0 %v87
    %115 = vmatprep.subr.mxu0 0.0
    %116 = vmatpush1.msra.mxu0 %v88
    %117 = vmatprep.subr.mxu0 0.0
    %118 = vmatpush1.msra.mxu0 %v103
    %119 = vmatprep.subr.mxu0 0.0
    %120 = vmatpush1.msra.mxu0 0.0
    %121 = vmatprep.subr.mxu0 0.0
    %122 = vmatpush1.msra.mxu0 0.0
    %123 = vmatprep.subr.mxu0 0.0
    %124 = vmatpush1.msra.mxu0 0.0
    %125 = vmatprep.subr.mxu0 0.0
    %126 = vmatpush1.msra.mxu0 0.0
    %127 = vmatprep.subr.mxu0 0.0
    %128 = vmatpush1.msra.mxu0 0.0
    %129 = vmatprep.subr.mxu0 0.0
    %130 = vmatpush1.msra.mxu0 0.0
    %131 = vmatprep.subr.mxu0 0.0
    %132 = vmatpush1.msra.mxu0 0.0
    %133 = vmatprep.subr.mxu0 0.0
    %134 = vmatpush1.msra.mxu0 0.0
    %135 = vmatprep.subr.mxu0 0.0
    %136 = vmatpush1.msra.mxu0 0.0
    %137 = vmatprep.subr.mxu0 0.0
    %138 = vmatpush1.msra.mxu0 0.0
    %139 = vmatprep.subr.mxu0 0.0
    %140 = vmatpush1.msra.mxu0 0.0
    %141 = vmatprep.subr.mxu0 0.0
    %142 = vmatpush1.msra.mxu0 0.0
    %143 = vmatprep.subr.mxu0 0.0
    %144 = vmatpush1.msra.mxu0 0.0
    %145 = vmatprep.subr.mxu0 0.0
    %146 = vmatpush1.msra.mxu0 0.0
    %147 = vmatprep.subr.mxu0 0.0
    %148 = vmatpush1.msra.mxu0 0.0
    %149 = vmatprep.subr.mxu0 0.0
    %150 = vmatpush1.msra.mxu0 0.0
    %151 = vmatprep.subr.mxu0 0.0
    %152 = vmatpush1.msra.mxu0 0.0
    %153 = vmatprep.subr.mxu0 0.0
    %154 = vmatpush1.msra.mxu0 0.0
    %155 = vmatprep.subr.mxu0 0.0
    %156 = vmatpush1.msra.mxu0 0.0
    %157 = vmatprep.subr.mxu0 0.0
    %158 = vmatpush1.msra.mxu0 0.0
    %159 = vmatprep.subr.mxu0 0.0
    %160 = vmatpush1.msra.mxu0 0.0
    %161 = vmatprep.subr.mxu0 0.0
    %162 = vmatpush1.msra.mxu0 0.0
    %163 = vmatprep.subr.mxu0 0.0
    %164 = vmatpush1.msra.mxu0 0.0
    %165 = vmatprep.subr.mxu0 0.0
    %166 = vmatpush1.msra.mxu0 0.0
    %167 = vmatprep.subr.mxu0 0.0
    %168 = vmatpush1.msra.mxu0 0.0
    %169 = vmatprep.mubr.f32.mxu0 0.0
    %170 = vmatmul.mubr.f32.gmra.mrb[0].mxu0 %v99
    %v171 = vpop.f32.mrb[0].mxu0
    %v172 = vadd.f32 %v95, %v171
    %v173 = vpop.f32.mrb[0].mxu0
    %174 = vdwg.mxu0
    %175 = vxpose.xlu0.b32.start [1/16] %v172, 128
    %176 = vxpose.xlu0.b32.cont [2/16] 0.0, 128
    %177 = vxpose.xlu0.b32.cont [3/16] 0.0, 128
    %178 = vxpose.xlu0.b32.cont [4/16] 0.0, 128
    %179 = vxpose.xlu0.b32.cont [5/16] 0.0, 128
    %180 = vxpose.xlu0.b32.cont [6/16] 0.0, 128
    %181 = vxpose.xlu0.b32.cont [7/16] 0.0, 128
    %182 = vxpose.xlu0.b32.cont [8/16] 0.0, 128
    %183 = vxpose.xlu0.b32.cont [9/16] 0.0, 128
    %184 = vxpose.xlu0.b32.cont [10/16] 0.0, 128
    %185 = vxpose.xlu0.b32.cont [11/16] 0.0, 128
    %186 = vxpose.xlu0.b32.cont [12/16] 0.0, 128
    %187 = vxpose.xlu0.b32.cont [13/16] 0.0, 128
    %188 = vxpose.xlu0.b32.cont [14/16] 0.0, 128
    %189 = vxpose.xlu0.b32.cont [15/16] 0.0, 128
    %190 = vxpose.xlu0.b32.end [16/16] 0.0, 128
    %v191 = vpop.trf.xlu0
    %v192 = vpop.trf.xlu0
    %v193 = vpop.trf.xlu0
    %v194 = vpop.trf.xlu0
    %v195 = vpop.trf.xlu0
    %v196 = vpop.trf.xlu0
    %v197 = vpop.trf.xlu0
    %v198 = vpop.trf.xlu0
    %v199 = vpop.trf.xlu0
    %v200 = vpop.trf.xlu0
    %v201 = vpop.trf.xlu0
    %v202 = vpop.trf.xlu0
    %v203 = vpop.trf.xlu0
    %v204 = vpop.trf.xlu0
    %v205 = vpop.trf.xlu0
    %v206 = vpop.trf.xlu0
    %vm207 = vcmask 58368
    %208 = vst.msk [vmem:[#allocation2] sm:$0x3] %vm207, %v191
    // Predicated region
    $region22: #{tpu_custom_call.1} parent=1 // pred_check
      _
    $region23: #{tpu_custom_call.1} parent=1 // pred_check_branch
      %210 = sbr.rel (0) target = $region25
    $region24: #{tpu_custom_call.1} parent=1 // pred_region
      %s212 = ssub.s32 32, 32
      %213 = vsyncadd [#allocation3], %s212
      %s215 = sshll.u32 [#allocation2], 4
      %s216 = int_to_ptr.vmem [resolvable:$true] %s215
      %218 = dma.vmem_to_hbm [thread:$0]  %s216, 32, %s5, [#allocation3]
    $region25: #{tpu_custom_call.1} parent=1 // pred_fallthru
      _
    // Predicated region
    $region26: #{tpu_custom_call.1} parent=1 // pred_check
      _
    $region27: #{tpu_custom_call.1} parent=1 // pred_check_branch
      %220 = sbr.rel (0) target = $region29
    $region28: #{tpu_custom_call.1} parent=1 // pred_region
      %221 = dma.done [#allocation3], 32
    $region29: #{tpu_custom_call.1} parent=1 // pred_fallthru
      _
    %222 = vsyncpa [#allocation3], 1

</llo_original>
